<compile_context>
chip_gen: v6e
topology: v6e:2x2x1
jax: 0.10.0
libtpu: 0.0.40
codegen_flags: <defaults>
</compile_context>

<pallas_src>
import functools

import jax
import jax.numpy as jnp
from jax.experimental import pallas as pl
from jax.experimental.pallas import tpu as pltpu


def _round_up(x, m):
    return (x + m - 1) // m * m


_VMEM_LIMIT = 32 * 1024 * 1024   # comfortable on v5e/v6e (128 MiB) and v7x (64 MiB)
_CONV_TM_CAP = 8192              # rows per conv-matmul grid step
_FC_TK_CAP = 16384               # >= ~1 MiB of fc weight DMA'd per grid step
_FC_SPLIT_K = 2                  # core-parallel K split (v7x has 2 TensorCores)


# ------------------------------------------------------------ conv matmul (nk == 1)
def _conv_matmul_kernel(x_ref, w_ref, b_ref, o_ref, *, slope):
    """Single-K-block matmul: y = leaky_relu(x @ w + b). No accumulator / pl.when."""
    y = jnp.dot(x_ref[...], w_ref[...], preferred_element_type=jnp.float32)
    y = y + b_ref[...]                              # f32 epilogue
    if slope is not None:
        y = jnp.where(y >= 0, y, slope * y)         # leaky_relu(0.2)
    o_ref[...] = y.astype(o_ref.dtype)


def _conv_matmul(x, w, b, slope, out_dtype=jnp.bfloat16, tm_cap=_CONV_TM_CAP):
    """y = leaky_relu(x @ w + b); x:(M,K) bf16, w:(K,N) bf16, b:(1,N) f32.

    K (= KH*KW*Cin) and N (= Cout) are small, so they are full-dim blocks and the
    whole weight stays resident in VMEM; only M is tiled.  No M/K/N padding:
    Pallas masks the ragged last M block and the garbage rows only feed output
    rows that are never stored.
    """
    M, K = x.shape
    K2, N = w.shape
    assert K == K2 and b.shape == (1, N)

    tm = M if M <= tm_cap else _round_up(tm_cap, 8)
    grid_m = pl.cdiv(M, tm)

    kernel = functools.partial(_conv_matmul_kernel, slope=slope)
    return pl.pallas_call(
        kernel,
        out_shape=jax.ShapeDtypeStruct((M, N), out_dtype),
        grid_spec=pltpu.PrefetchScalarGridSpec(
            num_scalar_prefetch=0,
            grid=(grid_m,),
            in_specs=[
                pl.BlockSpec((tm, K), lambda i: (i, 0)),
                pl.BlockSpec((K, N), lambda i: (0, 0)),   # whole weight resident
                pl.BlockSpec((1, N), lambda i: (0, 0)),
            ],
            out_specs=pl.BlockSpec((tm, N), lambda i: (i, 0)),
        ),
        compiler_params=pltpu.CompilerParams(
            dimension_semantics=("parallel",),            # M rows split across TCs
            vmem_limit_bytes=_VMEM_LIMIT,
        ),
        cost_estimate=pl.CostEstimate(
            flops=2 * M * K * N,
            transcendentals=0,
            bytes_accessed=(M * K + K * N) * 2
            + M * N * jnp.dtype(out_dtype).itemsize + N * 4,
        ),
    )(x, w, b)


# -------------------------------------------------------------------- fc matmul
def _fc_tiling(K, split_k=_FC_SPLIT_K, tk_cap=_FC_TK_CAP):
    """K-tile size, padded K, split factor and per-split step count for the fc."""
    tk = min(tk_cap, _round_up(pl.cdiv(K, split_k), 128))
    Kp = _round_up(K, split_k * tk)
    nk = Kp // (split_k * tk)
    return tk, Kp, split_k, nk


def _fc_matmul_kernel(x_ref, w_ref, o_ref, acc_ref):
    k = pl.program_id(1)

    @pl.when(k == 0)
    def _():
        acc_ref[...] = jnp.zeros_like(acc_ref)

    acc_ref[...] += jnp.dot(x_ref[...], w_ref[...],
                            preferred_element_type=jnp.float32)

    @pl.when(k == pl.num_programs(1) - 1)
    def _():
        o_ref[0] = acc_ref[...]


def pad_fc_weight(w_kxn):
    """One-time (init) K-padding + bf16 cast of the (flat, out) fc weight."""
    K, _ = w_kxn.shape
    _, Kp, _, _ = _fc_tiling(K)
    if Kp != K:
        w_kxn = jnp.pad(w_kxn, ((0, Kp - K), (0, 0)))
    return w_kxn.astype(jnp.bfloat16)


def _fc_matmul(x, w_pad, b):
    """y = x @ w + b; x:(M,K) bf16, w_pad:(Kp,N) bf16 (pre-padded at init), b:(N,).

    Grid = (split_k, nk): the outer "parallel" axis splits the K reduction across
    TensorCores (v7x megacore); each split accumulates its K chunk in an f32 VMEM
    scratch and writes an f32 partial that is reduced (+ bias) outside the kernel.
    """
    M, K = x.shape
    Kp, N = w_pad.shape
    tk, Kp2, split_k, nk = _fc_tiling(K)
    assert Kp == Kp2, f"fc weight padded to {Kp}, expected {Kp2} for K={K}"

    if Kp != K:
        # K zero-padding is required whenever the reduction is blocked (nk may be
        # > 1): out-of-bounds K reads would feed garbage into the accumulator.
        x = jnp.pad(x, ((0, 0), (0, Kp - K)))

    partials = pl.pallas_call(
        _fc_matmul_kernel,
        out_shape=jax.ShapeDtypeStruct((split_k, M, N), jnp.float32),
        grid_spec=pltpu.PrefetchScalarGridSpec(
            num_scalar_prefetch=0,
            grid=(split_k, nk),
            in_specs=[
                pl.BlockSpec((M, tk), lambda p, k: (0, p * nk + k)),
                pl.BlockSpec((tk, N), lambda p, k: (p * nk + k, 0)),
            ],
            out_specs=pl.BlockSpec((1, M, N), lambda p, k: (p, 0, 0)),
            scratch_shapes=[pltpu.VMEM((M, N), jnp.float32)],
        ),
        compiler_params=pltpu.CompilerParams(
            dimension_semantics=("parallel", "arbitrary"),
            vmem_limit_bytes=_VMEM_LIMIT,
        ),
        cost_estimate=pl.CostEstimate(
            flops=2 * M * Kp * N,
            transcendentals=0,
            bytes_accessed=(M * Kp + Kp * N) * 2 + split_k * M * N * 4,
        ),
    )(x, w_pad)
    return partials.sum(axis=0) + b


# ------------------------------------------------------------------------- conv
def _im2col_nhwc(x, kh, kw, sh, sw):
    """x: (N, H, W, C) -> (N*OH*OW, KH*KW*C); patch elements ordered (KH, KW, C)."""
    # TODO(synk): fold this into the conv kernel (overlapping-row windows / manual
    #             DMA) so the patch matrix never hits HBM.
    n, h, w, c = x.shape
    oh = (h - kh) // sh + 1
    ow = (w - kw) // sw + 1
    cols = []
    for i in range(kh):
        for j in range(kw):
            cols.append(x[:, i:i + sh * (oh - 1) + 1:sh,
                          j:j + sw * (ow - 1) + 1:sw, :])     # (N, OH, OW, C)
    cols = jnp.concatenate(cols, axis=-1)                     # (N, OH, OW, KH*KW*C)
    return cols.reshape(n * oh * ow, kh * kw * c), oh, ow


def conv2d_leaky(x_nhwc, wmat, bias, kh, kw, stride, slope=0.2,
                 out_dtype=jnp.bfloat16):
    """PyTorch-semantics Conv2d (no padding) + leaky_relu; NHWC in, NHWC out."""
    n = x_nhwc.shape[0]
    cols, oh, ow = _im2col_nhwc(x_nhwc, kh, kw, stride, stride)
    out = _conv_matmul(cols, wmat, bias, slope, out_dtype=out_dtype)
    return out.reshape(n, oh, ow, wmat.shape[1])              # stays NHWC


# ------------------------------------------------------------------------ model
def prepare_params(raw, conv_out_chw):
    """One-time weight pre-layout (no per-call transposes / pads / casts)."""
    convs = []
    for (w, b, _s) in raw["convs"]:
        cout, cin, kh, kw = w.shape
        # rows ordered (KH, KW, Cin) to match _im2col_nhwc patch ordering
        wmat = jnp.transpose(w, (2, 3, 1, 0)).reshape(kh * kw * cin, cout)
        convs.append((wmat.astype(jnp.bfloat16),
                      b.astype(jnp.float32).reshape(1, cout)))
    fc_w, fc_b = raw["fc"]
    c, h, w_ = conv_out_chw
    out_sz = fc_w.shape[0]
    # Fold the NCHW-flatten permutation into the fc rows so NHWC-flat @ fc_wmat
    # equals torch.flatten(NCHW) @ fc_w.T; pre-pad K once at init.
    fc_wmat = (fc_w.reshape(out_sz, c, h, w_)
               .transpose(0, 2, 3, 1)
               .reshape(out_sz, -1)).T                         # (flat, out)
    return {"convs": convs,
            "fc": (pad_fc_weight(fc_wmat), fc_b.astype(jnp.float32))}


def cnn_map_encoder_forward(x_nchw, params, conv_meta):
    """forward: for conv in convs: x = leaky_relu(conv(x), 0.2); flatten; fc."""
    # Single NCHW -> NHWC transpose with the bf16 cast fused in.
    x = jnp.transpose(x_nchw, (0, 2, 3, 1)).astype(jnp.bfloat16)
    for (wmat, bias), (kh, kw, s) in zip(params["convs"], conv_meta):
        x = conv2d_leaky(x, wmat, bias, kh, kw, s, slope=0.2)
    x = x.reshape(x.shape[0], -1)                 # NHWC flatten (fc rows permuted)
    fc_wmat, fc_b = params["fc"]
    return _fc_matmul(x, fc_wmat, fc_b)


def _reference_forward(x, raw):
    """Pure-JAX f32 reference with PyTorch (NCHW) semantics."""
    for (w, b, s) in raw["convs"]:
        x = jax.lax.conv_general_dilated(
            x, w, window_strides=(s, s), padding="VALID",
            dimension_numbers=("NCHW", "OIHW", "NCHW"))
        x = x + b.reshape(1, -1, 1, 1)
        x = jnp.where(x >= 0, x, 0.2 * x)
    x = x.reshape(x.shape[0], -1)
    fw, fb = raw["fc"]
    return x @ fw.T + fb


if __name__ == "__main__":
    # Small shapes consistent with the module (production uses 1500x1400 patches; the
    # fc input size is derived from the same conv arithmetic at 16x16).
    map_channels = 4
    hidden_channels = [8, 16]
    masks = [3, 3]
    strides = [2, 2]
    output_size = 32
    batch = 2
    patch_x = patch_y = 16

    key = jax.random.PRNGKey(0)
    keys = jax.random.split(key, 2 * len(hidden_channels) + 3)

    raw_convs, conv_meta = [], []
    in_c, h, w = map_channels, patch_x, patch_y
    ki = 0
    for i, out_c in enumerate(hidden_channels):
        kh = kw = masks[i]
        s = strides[i]
        fan_in = in_c * kh * kw
        wgt = jax.random.normal(keys[ki], (out_c, in_c, kh, kw), jnp.float32) / jnp.sqrt(fan_in)
        bia = jax.random.normal(keys[ki + 1], (out_c,), jnp.float32) * 0.01
        ki += 2
        raw_convs.append((wgt, bia, s))
        conv_meta.append((kh, kw, s))
        in_c = out_c
        h = (h - kh) // s + 1
        w = (w - kw) // s + 1

    flat = in_c * h * w  # matches x_dummy.numel() computed for this patch size
    fc_w = jax.random.normal(keys[ki], (output_size, flat), jnp.float32) / jnp.sqrt(flat)
    fc_b = jax.random.normal(keys[ki + 1], (output_size,), jnp.float32) * 0.01
    raw_params = {"convs": raw_convs, "fc": (fc_w, fc_b)}

    params = prepare_params(raw_params, (in_c, h, w))
    conv_meta = tuple(conv_meta)

    x = jax.random.normal(keys[ki + 2], (batch, map_channels, patch_x, patch_y), jnp.float32)

    # ------------------------------------------------ end-to-end forward + check
    fwd = jax.jit(cnn_map_encoder_forward, static_argnums=(2,))
    out = fwd(x, params, conv_meta)
    jax.block_until_ready(out)
    assert out.shape == (batch, output_size)

    ref = _reference_forward(x, raw_params)
    err = float(jnp.max(jnp.abs(out - ref)))
    assert err < 1e-1, f"forward max abs err {err}"

    # ------------------- extra coverage: tiled/ragged conv matmul (multi M blocks)
    tkeys = jax.random.split(jax.random.PRNGKey(1), 6)
    Mb, Kb, Nb = 5000, 72, 16
    xb = jax.random.normal(tkeys[0], (Mb, Kb), jnp.float32)
    wb = jax.random.normal(tkeys[1], (Kb, Nb), jnp.float32) / jnp.sqrt(Kb)
    bb = jax.random.normal(tkeys[2], (Nb,), jnp.float32) * 0.01
    yb = _conv_matmul(xb.astype(jnp.bfloat16), wb.astype(jnp.bfloat16),
                      bb.reshape(1, Nb), slope=0.2, tm_cap=2048)
    jax.block_until_ready(yb)
    yb_ref = (xb.astype(jnp.bfloat16).astype(jnp.float32)
              @ wb.astype(jnp.bfloat16).astype(jnp.float32) + bb)
    yb_ref = jnp.where(yb_ref >= 0, yb_ref, 0.2 * yb_ref)
    err_b = float(jnp.max(jnp.abs(yb.astype(jnp.float32) - yb_ref)))
    assert err_b < 5e-2, f"conv matmul max abs err {err_b}"

    # ------------------- extra coverage: multi-K-step, split-K fc matmul
    Mf, Kf, Nf = 2, 40000, output_size
    xf = jax.random.normal(tkeys[3], (Mf, Kf), jnp.float32)
    wf = jax.random.normal(tkeys[4], (Kf, Nf), jnp.float32) / jnp.sqrt(Kf)
    bf = jax.random.normal(tkeys[5], (Nf,), jnp.float32) * 0.01
    yf = _fc_matmul(xf.astype(jnp.bfloat16), pad_fc_weight(wf), bf)
    jax.block_until_ready(yf)
    yf_ref = (xf.astype(jnp.bfloat16).astype(jnp.float32)
              @ wf.astype(jnp.bfloat16).astype(jnp.float32) + bf)
    err_f = float(jnp.max(jnp.abs(yf - yf_ref)))
    assert err_f < 5e-2, f"fc matmul max abs err {err_f}"

    print("KERNEL_OK")
</pallas_src>

<mosaic_0001>
module attributes {stable_mosaic.version = 11 : i64} {
  func.func @_conv_matmul_kernel(%arg0: i32, %arg1: memref<98x36xbf16, #tpu.memory_space<vmem>>, %arg2: memref<36x8xbf16, #tpu.memory_space<vmem>>, %arg3: memref<1x8xf32, #tpu.memory_space<vmem>>, %arg4: memref<98x8xbf16, #tpu.memory_space<vmem>>) attributes {dimension_semantics = [#tpu.dimension_semantics<parallel>], iteration_bounds = array<i64: 1>, scalar_prefetch = 0 : i64, scratch_operands = 0 : i64, tpu.core_type = #tpu.core_type<tc>, window_params = [{transform_indices = @transform_0, window_bounds = array<i64: 98, 36>}, {pipeline_mode = #tpu.pipeline_mode<synchronous>, transform_indices = @transform_1, window_bounds = array<i64: 36, 8>}, {pipeline_mode = #tpu.pipeline_mode<synchronous>, transform_indices = @transform_2, window_bounds = array<i64: 1, 8>}, {transform_indices = @transform_3, window_bounds = array<i64: 98, 8>}]} {
    %c0 = arith.constant 0 : index
    %c0_0 = arith.constant 0 : index
    %0 = vector.load %arg1[%c0, %c0_0] : memref<98x36xbf16, #tpu.memory_space<vmem>>, vector<98x36xbf16>
    %c0_1 = arith.constant 0 : index
    %c0_2 = arith.constant 0 : index
    %1 = vector.load %arg2[%c0_1, %c0_2] : memref<36x8xbf16, #tpu.memory_space<vmem>>, vector<36x8xbf16>
    %cst = arith.constant dense<0.000000e+00> : vector<98x8xf32>
    %2 = tpu.matmul %0, %1, %cst {dimension_numbers = #tpu.dot_dimension_numbers<[1], [0], [0], [1], [0, 0, 1, 1], [], []>} : vector<98x36xbf16>, vector<36x8xbf16>, vector<98x8xf32> -> vector<98x8xf32>
    %c0_3 = arith.constant 0 : index
    %c0_4 = arith.constant 0 : index
    %3 = vector.load %arg3[%c0_3, %c0_4] : memref<1x8xf32, #tpu.memory_space<vmem>>, vector<1x8xf32>
    %4 = vector.broadcast %3 : vector<1x8xf32> to vector<98x8xf32>
    %5 = arith.addf %2, %4 : vector<98x8xf32>
    %cst_5 = arith.constant 0.000000e+00 : f32
    %6 = vector.broadcast %cst_5 : f32 to vector<98x8xf32>
    %7 = arith.cmpf oge, %5, %6 : vector<98x8xf32>
    %cst_6 = arith.constant 2.000000e-01 : f32
    %8 = vector.broadcast %cst_6 : f32 to vector<98x8xf32>
    %9 = arith.mulf %8, %5 : vector<98x8xf32>
    %10 = arith.select %7, %5, %9 : vector<98x8xi1>, vector<98x8xf32>
    %11 = arith.truncf %10 : vector<98x8xf32> to vector<98x8xbf16>
    %c0_7 = arith.constant 0 : index
    %c0_8 = arith.constant 0 : index
    %12 = vector.load %arg4[%c0_7, %c0_8] : memref<98x8xbf16, #tpu.memory_space<vmem>>, vector<98x8xbf16>
    tpu.vector_store %arg4[%c0_7, %c0_8], %11 {strides = array<i32>} : memref<98x8xbf16, #tpu.memory_space<vmem>>, vector<98x8xbf16>,
    return
  }
  func.func @transform_0(%arg0: i32) -> (i32, i32) {
    %c0_i32 = arith.constant 0 : i32
    %c0_i32_0 = arith.constant 0 : i32
    return %arg0, %c0_i32 : i32, i32
  }
  func.func @transform_1(%arg0: i32) -> (i32, i32) {
    %c0_i32 = arith.constant 0 : i32
    %c0_i32_0 = arith.constant 0 : i32
    %c0_i32_1 = arith.constant 0 : i32
    return %c0_i32, %c0_i32_0 : i32, i32
  }
  func.func @transform_2(%arg0: i32) -> (i32, i32) {
    %c0_i32 = arith.constant 0 : i32
    %c0_i32_0 = arith.constant 0 : i32
    %c0_i32_1 = arith.constant 0 : i32
    return %c0_i32, %c0_i32_0 : i32, i32
  }
  func.func @transform_3(%arg0: i32) -> (i32, i32) {
    %c0_i32 = arith.constant 0 : i32
    %c0_i32_0 = arith.constant 0 : i32
    return %arg0, %c0_i32 : i32, i32
  }
}

module attributes {stable_mosaic.version = 11 : i64} {
  func.func @_fc_matmul_kernel(%arg0: i32, %arg1: i32, %arg2: memref<2x128xbf16, #tpu.memory_space<vmem>>, %arg3: memref<128x32xbf16, #tpu.memory_space<vmem>>, %arg4: memref<1x2x32xf32, #tpu.memory_space<vmem>>, %arg5: memref<2x32xf32, #tpu.memory_space<vmem>>) attributes {dimension_semantics = [#tpu.dimension_semantics<parallel>, #tpu.dimension_semantics<arbitrary>], iteration_bounds = array<i64: 2, 1>, scalar_prefetch = 0 : i64, scratch_operands = 1 : i64, tpu.core_type = #tpu.core_type<tc>, window_params = [{transform_indices = @transform_0, window_bounds = array<i64: 2, 128>}, {transform_indices = @transform_1, window_bounds = array<i64: 128, 32>}, {transform_indices = @transform_2, window_bounds = array<i64: 1, 2, 32>}]} {
    %c0_i32 = arith.constant 0 : i32
    %0 = arith.cmpi eq, %arg1, %c0_i32 : i32
    %1 = arith.extui %0 : i1 to i32
    %c0_i32_0 = arith.constant 0 : i32
    %2 = arith.cmpi ne, %1, %c0_i32_0 : i32
    scf.if %2 {
      %cst_10 = arith.constant 0.000000e+00 : f32
      %12 = vector.broadcast %cst_10 : f32 to vector<2x32xf32>
      %c0_11 = arith.constant 0 : index
      %c0_12 = arith.constant 0 : index
      %13 = vector.load %arg5[%c0_11, %c0_12] : memref<2x32xf32, #tpu.memory_space<vmem>>, vector<2x32xf32>
      tpu.vector_store %arg5[%c0_11, %c0_12], %12 {strides = array<i32>} : memref<2x32xf32, #tpu.memory_space<vmem>>, vector<2x32xf32>,
    } else {
    }
    %c0 = arith.constant 0 : index
    %c0_1 = arith.constant 0 : index
    %3 = vector.load %arg5[%c0, %c0_1] : memref<2x32xf32, #tpu.memory_space<vmem>>, vector<2x32xf32>
    %c0_2 = arith.constant 0 : index
    %c0_3 = arith.constant 0 : index
    %4 = vector.load %arg2[%c0_2, %c0_3] : memref<2x128xbf16, #tpu.memory_space<vmem>>, vector<2x128xbf16>
    %c0_4 = arith.constant 0 : index
    %c0_5 = arith.constant 0 : index
    %5 = vector.load %arg3[%c0_4, %c0_5] : memref<128x32xbf16, #tpu.memory_space<vmem>>, vector<128x32xbf16>
    %cst = arith.constant dense<0.000000e+00> : vector<2x32xf32>
    %6 = tpu.matmul %4, %5, %cst {dimension_numbers = #tpu.dot_dimension_numbers<[1], [0], [0], [1], [0, 0, 1, 1], [], []>} : vector<2x128xbf16>, vector<128x32xbf16>, vector<2x32xf32> -> vector<2x32xf32>
    %7 = arith.addf %3, %6 : vector<2x32xf32>
    %c0_6 = arith.constant 0 : index
    %c0_7 = arith.constant 0 : index
    %8 = vector.load %arg5[%c0_6, %c0_7] : memref<2x32xf32, #tpu.memory_space<vmem>>, vector<2x32xf32>
    tpu.vector_store %arg5[%c0_6, %c0_7], %7 {strides = array<i32>} : memref<2x32xf32, #tpu.memory_space<vmem>>, vector<2x32xf32>,
    %c0_i32_8 = arith.constant 0 : i32
    %9 = arith.cmpi eq, %arg1, %c0_i32_8 : i32
    %10 = arith.extui %9 : i1 to i32
    %c0_i32_9 = arith.constant 0 : i32
    %11 = arith.cmpi ne, %10, %c0_i32_9 : i32
    scf.if %11 {
      %c0_10 = arith.constant 0 : index
      %c0_11 = arith.constant 0 : index
      %12 = vector.load %arg5[%c0_10, %c0_11] : memref<2x32xf32, #tpu.memory_space<vmem>>, vector<2x32xf32>
      %c0_12 = arith.constant 0 : index
      %c0_13 = arith.constant 0 : index
      %c0_14 = arith.constant 0 : index
      %13 = vector.load %arg4[%c0_12, %c0_13, %c0_14] : memref<1x2x32xf32, #tpu.memory_space<vmem>>, vector<1x2x32xf32>
      %14 = vector.shape_cast %13 : vector<1x2x32xf32> to vector<2x32xf32>
      %15 = vector.shape_cast %12 : vector<2x32xf32> to vector<1x2x32xf32>
      tpu.vector_store %arg4[%c0_12, %c0_13, %c0_14], %15 {strides = array<i32>} : memref<1x2x32xf32, #tpu.memory_space<vmem>>, vector<1x2x32xf32>,
    } else {
    }
    return
  }
  func.func @transform_0(%arg0: i32, %arg1: i32) -> (i32, i32) {
    %c1_i32 = arith.constant 1 : i32
    %0 = arith.muli %arg0, %c1_i32 : i32
    %1 = arith.addi %0, %arg1 : i32
    %c0_i32 = arith.constant 0 : i32
    %c0_i32_0 = arith.constant 0 : i32
    return %c0_i32, %1 : i32, i32
  }
  func.func @transform_1(%arg0: i32, %arg1: i32) -> (i32, i32) {
    %c1_i32 = arith.constant 1 : i32
    %0 = arith.muli %arg0, %c1_i32 : i32
    %1 = arith.addi %0, %arg1 : i32
    %c0_i32 = arith.constant 0 : i32
    %c0_i32_0 = arith.constant 0 : i32
    return %1, %c0_i32 : i32, i32
  }
  func.func @transform_2(%arg0: i32, %arg1: i32) -> (i32, i32, i32) {
    %c0_i32 = arith.constant 0 : i32
    %c0_i32_0 = arith.constant 0 : i32
    %c0_i32_1 = arith.constant 0 : i32
    return %arg0, %c0_i32, %c0_i32_0 : i32, i32, i32
  }
}

module attributes {stable_mosaic.version = 11 : i64} {
  func.func @_conv_matmul_kernel(%arg0: i32, %arg1: memref<18x72xbf16, #tpu.memory_space<vmem>>, %arg2: memref<72x16xbf16, #tpu.memory_space<vmem>>, %arg3: memref<1x16xf32, #tpu.memory_space<vmem>>, %arg4: memref<18x16xbf16, #tpu.memory_space<vmem>>) attributes {dimension_semantics = [#tpu.dimension_semantics<parallel>], iteration_bounds = array<i64: 1>, scalar_prefetch = 0 : i64, scratch_operands = 0 : i64, tpu.core_type = #tpu.core_type<tc>, window_params = [{transform_indices = @transform_0, window_bounds = array<i64: 18, 72>}, {pipeline_mode = #tpu.pipeline_mode<synchronous>, transform_indices = @transform_1, window_bounds = array<i64: 72, 16>}, {pipeline_mode = #tpu.pipeline_mode<synchronous>, transform_indices = @transform_2, window_bounds = array<i64: 1, 16>}, {transform_indices = @transform_3, window_bounds = array<i64: 18, 16>}]} {
    %c0 = arith.constant 0 : index
    %c0_0 = arith.constant 0 : index
    %0 = vector.load %arg1[%c0, %c0_0] : memref<18x72xbf16, #tpu.memory_space<vmem>>, vector<18x72xbf16>
    %c0_1 = arith.constant 0 : index
    %c0_2 = arith.constant 0 : index
    %1 = vector.load %arg2[%c0_1, %c0_2] : memref<72x16xbf16, #tpu.memory_space<vmem>>, vector<72x16xbf16>
    %cst = arith.constant dense<0.000000e+00> : vector<18x16xf32>
    %2 = tpu.matmul %0, %1, %cst {dimension_numbers = #tpu.dot_dimension_numbers<[1], [0], [0], [1], [0, 0, 1, 1], [], []>} : vector<18x72xbf16>, vector<72x16xbf16>, vector<18x16xf32> -> vector<18x16xf32>
    %c0_3 = arith.constant 0 : index
    %c0_4 = arith.constant 0 : index
    %3 = vector.load %arg3[%c0_3, %c0_4] : memref<1x16xf32, #tpu.memory_space<vmem>>, vector<1x16xf32>
    %4 = vector.broadcast %3 : vector<1x16xf32> to vector<18x16xf32>
    %5 = arith.addf %2, %4 : vector<18x16xf32>
    %cst_5 = arith.constant 0.000000e+00 : f32
    %6 = vector.broadcast %cst_5 : f32 to vector<18x16xf32>
    %7 = arith.cmpf oge, %5, %6 : vector<18x16xf32>
    %cst_6 = arith.constant 2.000000e-01 : f32
    %8 = vector.broadcast %cst_6 : f32 to vector<18x16xf32>
    %9 = arith.mulf %8, %5 : vector<18x16xf32>
    %10 = arith.select %7, %5, %9 : vector<18x16xi1>, vector<18x16xf32>
    %11 = arith.truncf %10 : vector<18x16xf32> to vector<18x16xbf16>
    %c0_7 = arith.constant 0 : index
    %c0_8 = arith.constant 0 : index
    %12 = vector.load %arg4[%c0_7, %c0_8] : memref<18x16xbf16, #tpu.memory_space<vmem>>, vector<18x16xbf16>
    tpu.vector_store %arg4[%c0_7, %c0_8], %11 {strides = array<i32>} : memref<18x16xbf16, #tpu.memory_space<vmem>>, vector<18x16xbf16>,
    return
  }
  func.func @transform_0(%arg0: i32) -> (i32, i32) {
    %c0_i32 = arith.constant 0 : i32
    %c0_i32_0 = arith.constant 0 : i32
    return %arg0, %c0_i32 : i32, i32
  }
  func.func @transform_1(%arg0: i32) -> (i32, i32) {
    %c0_i32 = arith.constant 0 : i32
    %c0_i32_0 = arith.constant 0 : i32
    %c0_i32_1 = arith.constant 0 : i32
    return %c0_i32, %c0_i32_0 : i32, i32
  }
  func.func @transform_2(%arg0: i32) -> (i32, i32) {
    %c0_i32 = arith.constant 0 : i32
    %c0_i32_0 = arith.constant 0 : i32
    %c0_i32_1 = arith.constant 0 : i32
    return %c0_i32, %c0_i32_0 : i32, i32
  }
  func.func @transform_3(%arg0: i32) -> (i32, i32) {
    %c0_i32 = arith.constant 0 : i32
    %c0_i32_0 = arith.constant 0 : i32
    return %arg0, %c0_i32 : i32, i32
  }
}

</mosaic_0001>

<llo_original>
// kernel: cnn_map_encoder_forward.3
$region0: #{cnn_map_encoder_forward.3}
  #allocation0 [shape = 'u32[]', space=smem, size = 0x4, offset = 0x4, fixed_abs, tag = 'smem constant byte address 0x4 - core index']
  #allocation1 [shape = 'u32[144,128]{1,0:T(1,128)}', space=vmem, size = 0x12000, scoped, tag = 'internal scratch']
  %s0 = inlined_call_operand.vmem [shape: bf16[98,36], index: 0, kind: input, shape index: {}]
  %s1 = inlined_call_operand.vmem [shape: bf16[36,8], index: 1, kind: input, shape index: {}]
  %s2 = inlined_call_operand.vmem [shape: f32[1,8], index: 2, kind: input, shape index: {}]
  %s3 = inlined_call_operand.vmem [shape: bf16[98,8], index: 3, kind: output, shape index: {}]
  %s4 = sld [smem:[#allocation0]]
  $region22: #{cnn_map_encoder_forward.3} parent=0
    _
  %s6 = ssub.s32 1, %s4
  %s7 = scalar_select 0, %s6, %s4
  // Predicated region
  $region2: #{cnn_map_encoder_forward.3} parent=0 // pred_check
    _
  $region3: #{cnn_map_encoder_forward.3} parent=0 // pred_check_branch
    %9 = sbr.rel (0) target = $region5
  $region4: #{cnn_map_encoder_forward.3} parent=0 // pred_region
    _
  $region5: #{cnn_map_encoder_forward.3} parent=0 // pred_fallthru
    _
  // Predicated region
  $region6: #{cnn_map_encoder_forward.3} parent=0 // pred_check
    _
  $region7: #{cnn_map_encoder_forward.3} parent=0 // pred_check_branch
    %11 = sbr.rel (0) target = $region9
  $region8: #{cnn_map_encoder_forward.3} parent=0 // pred_region
    _
  $region9: #{cnn_map_encoder_forward.3} parent=0 // pred_fallthru
    _
  // Predicated region
  $region10: #{cnn_map_encoder_forward.3} parent=0 // pred_check
    _
  $region11: #{cnn_map_encoder_forward.3} parent=0 // pred_check_branch
    %13 = sbr.rel (0) target = $region13
  $region12: #{cnn_map_encoder_forward.3} parent=0 // pred_region
    _
  $region13: #{cnn_map_encoder_forward.3} parent=0 // pred_fallthru
    _
  %v15 = vld [vmem:[%s0] sm:$0xf]
  %v16 = vld [vmem:[%s0 + $0x4] sm:$0xf]
  %v17 = vld [vmem:[%s0 + $0x8] sm:$0xf]
  %v18 = vld [vmem:[%s0 + $0xc] sm:$0xf]
  %v19 = vld [vmem:[%s0 + $0x10] sm:$0xf]
  %v20 = vld [vmem:[%s0 + $0x14] sm:$0xf]
  %v21 = vld [vmem:[%s0 + $0x18] sm:$0xf]
  %v22 = vld [vmem:[%s0 + $0x1c] sm:$0xf]
  %v23 = vld [vmem:[%s0 + $0x20] sm:$0xf]
  %v24 = vld [vmem:[%s0 + $0x24] sm:$0xf]
  %v25 = vld [vmem:[%s0 + $0x28] sm:$0xf]
  %v26 = vld [vmem:[%s0 + $0x2c] sm:$0xf]
  %v27 = vld [vmem:[%s0 + $0x30] sm:$0x1]
  %v28 = vld [vmem:[%s1] sm:$0xf]
  %v29 = vld [vmem:[%s1 + $0x4] sm:$0xf]
  %v30 = vld [vmem:[%s1 + $0x8] sm:$0xf]
  %v31 = vld [vmem:[%s1 + $0xc] sm:$0xf]
  %v32 = vld [vmem:[%s1 + $0x10] sm:$0x3]
  %v33 = vld [vmem:[%s2] sm:$0x1]
  %v35 = vlaneseq
  %v36 = vshrl.u32 %v35, 7
  %v37 = vsub.s32 0, %v36
  %v38 = vrot.slane %v33, %v37
  %v53 = vunpack.c.l.b16 %v15
  %v54 = vunpack.c.l.b16 %v16
  %v55 = vunpack.c.l.b16 %v17
  %v56 = vunpack.c.l.b16 %v18
  %v57 = vunpack.c.l.b16 %v19
  %v58 = vunpack.c.l.b16 %v20
  %v59 = vunpack.c.l.b16 %v21
  %v60 = vunpack.c.l.b16 %v22
  %v61 = vunpack.c.l.b16 %v23
  %v62 = vunpack.c.l.b16 %v24
  %v63 = vunpack.c.l.b16 %v25
  %v64 = vunpack.c.l.b16 %v26
  %v65 = vunpack.c.l.b16 %v27
  %v66 = vpack.c.b16 %v54, %v53
  %v67 = vpack.c.b16 %v56, %v55
  %v68 = vpack.c.b16 %v58, %v57
  %v69 = vpack.c.b16 %v60, %v59
  %v70 = vpack.c.b16 %v62, %v61
  %v71 = vpack.c.b16 %v64, %v63
  %v72 = vpack.c.b16 %v65, %v65
  %v78 = vunpack.c.l.b16 %v28
  %v79 = vunpack.c.l.b16 %v29
  %v80 = vunpack.c.l.b16 %v30
  %v81 = vunpack.c.l.b16 %v31
  %v82 = vunpack.c.l.b16 %v32
  %v83 = vpack.c.b16 %v79, %v78
  %v84 = vpack.c.b16 %v81, %v80
  %v85 = vpack.c.b16 %v82, %v82
  %vm88 = vcmask 293888
  %v90 = vsel %vm88, %v66, 0
  %v93 = vsel %vm88, %v67, 0
  %v96 = vsel %vm88, %v68, 0
  %v99 = vsel %vm88, %v69, 0
  %v102 = vsel %vm88, %v70, 0
  %v105 = vsel %vm88, %v71, 0
  %v108 = vsel %vm88, %v72, 0
  %vm110 = vcmask 1041408
  %v112 = vsel %vm110, %v85, 0
  %114 = vmatprep.subr.bf16.mxu0 0
  %115 = vmatpush1.bf16.msra.mxu0 0
  %116 = vmatprep.subr.bf16.mxu0 0
  %117 = vmatpush1.bf16.msra.mxu0 0
  %118 = vmatprep.subr.bf16.mxu0 0
  %119 = vmatpush1.bf16.msra.mxu0 0
  %120 = vmatprep.subr.bf16.mxu0 0
  %121 = vmatpush1.bf16.msra.mxu0 0
  %122 = vmatprep.subr.bf16.mxu0 0
  %123 = vmatpush1.bf16.msra.mxu0 0
  %124 = vmatprep.subr.bf16.mxu0 0
  %125 = vmatpush1.bf16.msra.mxu0 %v112
  %126 = vmatprep.subr.bf16.mxu0 0
  %127 = vmatpush1.bf16.msra.mxu0 %v84
  %128 = vmatprep.subr.bf16.mxu0 0
  %129 = vmatpush1.bf16.msra.mxu0 %v83
  %130 = vmatprep.subr.bf16.mxu0 0
  %131 = vmatpush2.bf16.msra.mxu0 0
  %132 = vmatprep.subr.bf16.mxu0 0
  %133 = vmatpush2.bf16.msra.mxu0 0
  %134 = vmatprep.subr.bf16.mxu0 0
  %135 = vmatpush2.bf16.msra.mxu0 0
  %136 = vmatprep.subr.bf16.mxu0 0
  %137 = vmatpush2.bf16.msra.mxu0 0
  %138 = vmatprep.subr.bf16.mxu0 0
  %139 = vmatpush2.bf16.msra.mxu0 0
  %140 = vmatprep.subr.bf16.mxu0 0
  %141 = vmatpush2.bf16.msra.mxu0 0
  %142 = vmatprep.subr.bf16.mxu0 0
  %143 = vmatpush2.bf16.msra.mxu0 0
  %144 = vmatprep.subr.bf16.mxu0 0
  %145 = vmatpush2.bf16.msra.mxu0 0
  %146 = vmatprep.mubr.bf16.mxu0 0
  %147 = vmatmul.mubr.bf16.gmra.mxu0 %v90
  %v148 = vpop.f32.mrf.mxu0
  %v149 = vadd.f32 %v38, %v148
  %v150 = vpop.f32.mrf.mxu0
  %v151 = vpop.f32.mrf.mxu0
  %v152 = vadd.f32 %v38, %v151
  %v153 = vpop.f32.mrf.mxu0
  %154 = vmatprep.mubr.bf16.mxu0 0
  %155 = vmatmul.mubr.bf16.gmra.mxu0 %v93
  %v156 = vpop.f32.mrf.mxu0
  %v157 = vadd.f32 %v38, %v156
  %v158 = vpop.f32.mrf.mxu0
  %v159 = vpop.f32.mrf.mxu0
  %v160 = vadd.f32 %v38, %v159
  %v161 = vpop.f32.mrf.mxu0
  %162 = vmatprep.mubr.bf16.mxu0 0
  %163 = vmatmul.mubr.bf16.gmra.mxu0 %v96
  %v164 = vpop.f32.mrf.mxu0
  %v165 = vadd.f32 %v38, %v164
  %v166 = vpop.f32.mrf.mxu0
  %v167 = vpop.f32.mrf.mxu0
  %v168 = vadd.f32 %v38, %v167
  %v169 = vpop.f32.mrf.mxu0
  %170 = vmatprep.mubr.bf16.mxu0 0
  %171 = vmatmul.mubr.bf16.gmra.mxu0 %v99
  %v172 = vpop.f32.mrf.mxu0
  %v173 = vadd.f32 %v38, %v172
  %v174 = vpop.f32.mrf.mxu0
  %v175 = vpop.f32.mrf.mxu0
  %v176 = vadd.f32 %v38, %v175
  %v177 = vpop.f32.mrf.mxu0
  %178 = vmatprep.mubr.bf16.mxu0 0
  %179 = vmatmul.mubr.bf16.gmra.mxu0 %v102
  %v180 = vpop.f32.mrf.mxu0
  %v181 = vadd.f32 %v38, %v180
  %v182 = vpop.f32.mrf.mxu0
  %v183 = vpop.f32.mrf.mxu0
  %v184 = vadd.f32 %v38, %v183
  %v185 = vpop.f32.mrf.mxu0
  %186 = vmatprep.mubr.bf16.mxu0 0
  %187 = vmatmul.mubr.bf16.gmra.mxu0 %v105
  %v188 = vpop.f32.mrf.mxu0
  %v189 = vadd.f32 %v38, %v188
  %v190 = vpop.f32.mrf.mxu0
  %v191 = vpop.f32.mrf.mxu0
  %v192 = vadd.f32 %v38, %v191
  %v193 = vpop.f32.mrf.mxu0
  %194 = vmatprep.mubr.bf16.mxu0 0
  %195 = vmatmul.mubr.bf16.gmra.mxu0 %v108
  %v196 = vpop.f32.mrf.mxu0
  %v197 = vadd.f32 %v38, %v196
  %v198 = vpop.f32.mrf.mxu0
  %v199 = vpop.f32.mrf.mxu0
  %v200 = vpop.f32.mrf.mxu0
  %201 = vdwg.mxu0
  %vm202 = vcmp.ge.f32.partialorder %v149, 0.0
  %vm203 = vcmp.ge.f32.partialorder %v152, 0.0
  %vm204 = vcmp.ge.f32.partialorder %v157, 0.0
  %vm205 = vcmp.ge.f32.partialorder %v160, 0.0
  %vm206 = vcmp.ge.f32.partialorder %v165, 0.0
  %vm207 = vcmp.ge.f32.partialorder %v168, 0.0
  %vm208 = vcmp.ge.f32.partialorder %v173, 0.0
  %vm209 = vcmp.ge.f32.partialorder %v176, 0.0
  %vm210 = vcmp.ge.f32.partialorder %v181, 0.0
  %vm211 = vcmp.ge.f32.partialorder %v184, 0.0
  %vm212 = vcmp.ge.f32.partialorder %v189, 0.0
  %vm213 = vcmp.ge.f32.partialorder %v192, 0.0
  %vm214 = vcmp.ge.f32.partialorder %v197, 0.0
  %v215 = vmul.f32 %v149, 0.2
  %v216 = vmul.f32 %v152, 0.2
  %v217 = vmul.f32 %v157, 0.2
  %v218 = vmul.f32 %v160, 0.2
  %v219 = vmul.f32 %v165, 0.2
  %v220 = vmul.f32 %v168, 0.2
  %v221 = vmul.f32 %v173, 0.2
  %v222 = vmul.f32 %v176, 0.2
  %v223 = vmul.f32 %v181, 0.2
  %v224 = vmul.f32 %v184, 0.2
  %v225 = vmul.f32 %v189, 0.2
  %v226 = vmul.f32 %v192, 0.2
  %v227 = vmul.f32 %v197, 0.2
  %v228 = vsel %vm202, %v149, %v215
  %v229 = vsel %vm203, %v152, %v216
  %v230 = vsel %vm204, %v157, %v217
  %v231 = vsel %vm205, %v160, %v218
  %v232 = vsel %vm206, %v165, %v219
  %v233 = vsel %vm207, %v168, %v220
  %v234 = vsel %vm208, %v173, %v221
  %v235 = vsel %vm209, %v176, %v222
  %v236 = vsel %vm210, %v181, %v223
  %v237 = vsel %vm211, %v184, %v224
  %v238 = vsel %vm212, %v189, %v225
  %v239 = vsel %vm213, %v192, %v226
  %v240 = vsel %vm214, %v197, %v227
  %v241 = vpack.c.bf16 %v229, %v228
  %v242 = vpack.c.bf16 %v231, %v230
  %v243 = vpack.c.bf16 %v233, %v232
  %v244 = vpack.c.bf16 %v235, %v234
  %v245 = vpack.c.bf16 %v237, %v236
  %v246 = vpack.c.bf16 %v239, %v238
  %v247 = vpack.c.bf16 %v240, %v240
  %v255 = vunpack.c.l.b16 %v241
  %v256 = vunpack.c.h.b16 %v241
  %v257 = vunpack.c.l.b16 %v242
  %v258 = vunpack.c.h.b16 %v242
  %v259 = vunpack.c.l.b16 %v243
  %v260 = vunpack.c.h.b16 %v243
  %v261 = vunpack.c.l.b16 %v244
  %v262 = vunpack.c.h.b16 %v244
  %v263 = vunpack.c.l.b16 %v245
  %v264 = vunpack.c.h.b16 %v245
  %v265 = vunpack.c.l.b16 %v246
  %v266 = vunpack.c.h.b16 %v246
  %v267 = vunpack.c.l.b16 %v247
  %v268 = vpack.c.b16 %v255, %v255
  %v269 = vpack.c.b16 %v256, %v256
  %v270 = vpack.c.b16 %v257, %v257
  %v271 = vpack.c.b16 %v258, %v258
  %v272 = vpack.c.b16 %v259, %v259
  %v273 = vpack.c.b16 %v260, %v260
  %v274 = vpack.c.b16 %v261, %v261
  %v275 = vpack.c.b16 %v262, %v262
  %v276 = vpack.c.b16 %v263, %v263
  %v277 = vpack.c.b16 %v264, %v264
  %v278 = vpack.c.b16 %v265, %v265
  %v279 = vpack.c.b16 %v266, %v266
  %v280 = vpack.c.b16 %v267, %v267
  %vm294 = vcmask 60416
  %295 = vst.msk [vmem:[%s3] sm:$0xf] %vm294, %v268
  %296 = vst.msk [vmem:[%s3 + $0x4] sm:$0xf] %vm294, %v269
  %297 = vst.msk [vmem:[%s3 + $0x8] sm:$0xf] %vm294, %v270
  %298 = vst.msk [vmem:[%s3 + $0xc] sm:$0xf] %vm294, %v271
  %299 = vst.msk [vmem:[%s3 + $0x10] sm:$0xf] %vm294, %v272
  %300 = vst.msk [vmem:[%s3 + $0x14] sm:$0xf] %vm294, %v273
  %301 = vst.msk [vmem:[%s3 + $0x18] sm:$0xf] %vm294, %v274
  %302 = vst.msk [vmem:[%s3 + $0x1c] sm:$0xf] %vm294, %v275
  %303 = vst.msk [vmem:[%s3 + $0x20] sm:$0xf] %vm294, %v276
  %304 = vst.msk [vmem:[%s3 + $0x24] sm:$0xf] %vm294, %v277
  %305 = vst.msk [vmem:[%s3 + $0x28] sm:$0xf] %vm294, %v278
  %306 = vst.msk [vmem:[%s3 + $0x2c] sm:$0xf] %vm294, %v279
  %vm307 = vcmask 57344
  %308 = vst.msk [vmem:[%s3 + $0x30] sm:$0x1] %vm307, %v280
  // Predicated region
  $region14: #{cnn_map_encoder_forward.3} parent=0 // pred_check
    _
  $region15: #{cnn_map_encoder_forward.3} parent=0 // pred_check_branch
    %310 = sbr.rel (0) target = $region17
  $region16: #{cnn_map_encoder_forward.3} parent=0 // pred_region
    _
  $region17: #{cnn_map_encoder_forward.3} parent=0 // pred_fallthru
    _
  // Predicated region
  $region18: #{cnn_map_encoder_forward.3} parent=0 // pred_check
    _
  $region19: #{cnn_map_encoder_forward.3} parent=0 // pred_check_branch
    %312 = sbr.rel (0) target = $region21
  $region20: #{cnn_map_encoder_forward.3} parent=0 // pred_region
    _
  $region21: #{cnn_map_encoder_forward.3} parent=0 // pred_fallthru
    _

// kernel: cnn_map_encoder_forward.5
$region0: #{cnn_map_encoder_forward.5}
  #allocation0 [shape = 'u32[]', space=smem, size = 0x4, offset = 0x4, fixed_abs, tag = 'smem constant byte address 0x4 - core index']
  #allocation1 [shape = 'u32[144,128]{1,0:T(1,128)}', space=vmem, size = 0x12000, scoped, tag = 'internal scratch']
  #allocation2 [shape = 'f32[2,32]{1,0:T(2,128)}', space=vmem, size = 0x400, scoped, tag = 'scratch operand']
  %s0 = inlined_call_operand.vmem [shape: bf16[2,256], index: 0, kind: input, shape index: {}]
  %s1 = inlined_call_operand.vmem [shape: bf16[256,32], index: 1, kind: input, shape index: {}]
  %s2 = inlined_call_operand.vmem [shape: f32[2,2,32], index: 2, kind: output, shape index: {}]
  %s3 = sld [smem:[#allocation0]]
  $region49: #{cnn_map_encoder_forward.5} parent=0
    _
  %s5 = ssub.s32 1, %s3
  %s6 = scalar_select 0, %s5, %s3
  loop: start=0, step=1, limit=4
  $region2: #{cnn_map_encoder_forward.5} parent=0 // loop_pre_header
    _
  $region3: #{cnn_map_encoder_forward.5} parent=0 // loop_header
    %s8 = sphi 0, %s12
    %p9 = scmp.ge.s32.totalorder %s8, 4
    %s15 = sphi 0, %s27
    %s16 = sphi 0, %s23
    %s17 = sphi 0, %s15
    %s18 = sphi 0, %s16
    %s19 = sphi 0, %s17
    %s20 = sphi 0, %s18
    %s32 = sphi 0, %s34
    %s35 = sphi 0, %s32
    %s36 = sphi 0, %s35
    %s52 = sphi 0, %s36
    %s60 = sphi 0, %s62
    %s63 = sphi 0, %s60
    %s64 = sphi 0, %s63
    %s80 = sphi 0, %s64
    %s86 = sphi 0, %s88
    %s89 = sphi 0, %s86
    %s90 = sphi 0, %s89
    %s106 = sphi 0, %s90
  $region4: #{cnn_map_encoder_forward.5} parent=0 // loop_header_branch
    %11 = sbr.rel (%p9) target = $region8
  $region5: #{cnn_map_encoder_forward.5} parent=0 // loop_body
    %s13 = ssub.s32 %s8, 1
    %s14 = ssub.s32 %s8, 2
    %s21 = sadd.s32 1, %s16
    %p22 = scmp.ge.s32.totalorder %s21, 1
    %s23 = scalar_select %p22, 0, %s21
    %s24 = sadd.s32 1, %s15
    %s25 = scalar_select %p22, %s24, %s15
    %p26 = scmp.ge.s32.totalorder %s25, 2
    %s27 = scalar_select %p26, 0, %s25
    %s28 = sadd.s32 %s15, %s16
    %s29 = sadd.s32 %s27, %s23
    %s30 = ssub.s32 %s28, %s29
    %p31 = scmp.eq.s32.totalorder %s30, 0
    %s33 = sadd.s32 %s32, 1
    %s34 = scalar_select %p31, %s32, %s33
    %p37 = pneg %p31
    %p38 = scmp.eq.s32.totalorder %s8, 1
    %p39 = por %p37, %p38
    %p40 = scmp.ne.s32.totalorder %s32, %s35
    %p41 = scmp.eq.s32.totalorder %s8, 0
    %p42 = por %p40, %p41
    %p43 = scmp.ne.s32.totalorder %s32, %s35
    %p44 = scmp.eq.s32.totalorder %s13, 1
    %p45 = por %p43, %p44
    %p46 = scmp.ne.s32.totalorder %s35, %s36
    %p47 = scmp.eq.s32.totalorder %s13, 0
    %p48 = por %p46, %p47
    %p49 = scmp.ne.s32.totalorder %s35, %s36
    %p50 = scmp.eq.s32.totalorder %s14, 1
    %p51 = por %p49, %p50
    %p53 = scmp.ne.s32.totalorder %s36, %s52
    %p54 = scmp.eq.s32.totalorder %s14, 0
    %p55 = por %p53, %p54
    %s56 = sadd.s32 %s15, %s16
    %s57 = sadd.s32 %s27, %s23
    %s58 = ssub.s32 %s56, %s57
    %p59 = scmp.eq.s32.totalorder %s58, 0
    %s61 = sadd.s32 %s60, 1
    %s62 = scalar_select %p59, %s60, %s61
    %p65 = pneg %p59
    %p66 = scmp.eq.s32.totalorder %s8, 1
    %p67 = por %p65, %p66
    %p68 = scmp.ne.s32.totalorder %s60, %s63
    %p69 = scmp.eq.s32.totalorder %s8, 0
    %p70 = por %p68, %p69
    %p71 = scmp.ne.s32.totalorder %s60, %s63
    %p72 = scmp.eq.s32.totalorder %s13, 1
    %p73 = por %p71, %p72
    %p74 = scmp.ne.s32.totalorder %s63, %s64
    %p75 = scmp.eq.s32.totalorder %s13, 0
    %p76 = por %p74, %p75
    %p77 = scmp.ne.s32.totalorder %s63, %s64
    %p78 = scmp.eq.s32.totalorder %s14, 1
    %p79 = por %p77, %p78
    %p81 = scmp.ne.s32.totalorder %s64, %s80
    %p82 = scmp.eq.s32.totalorder %s14, 0
    %p83 = por %p81, %p82
    %s84 = ssub.s32 %s15, %s27
    %p85 = scmp.eq.s32.totalorder %s84, 0
    %s87 = sadd.s32 %s86, 1
    %s88 = scalar_select %p85, %s86, %s87
    %p91 = pneg %p85
    %p92 = scmp.eq.s32.totalorder %s8, 1
    %p93 = por %p91, %p92
    %p94 = scmp.ne.s32.totalorder %s86, %s89
    %p95 = scmp.eq.s32.totalorder %s8, 0
    %p96 = por %p94, %p95
    %p97 = scmp.ne.s32.totalorder %s86, %s89
    %p98 = scmp.eq.s32.totalorder %s13, 1
    %p99 = por %p97, %p98
    %p100 = scmp.ne.s32.totalorder %s89, %s90
    %p101 = scmp.eq.s32.totalorder %s13, 0
    %p102 = por %p100, %p101
    %p103 = scmp.ne.s32.totalorder %s89, %s90
    %p104 = scmp.eq.s32.totalorder %s14, 1
    %p105 = por %p103, %p104
    %p107 = scmp.ne.s32.totalorder %s90, %s106
    %p108 = scmp.eq.s32.totalorder %s14, 0
    %p109 = por %p107, %p108
    %p110 = scmp.le.s32.totalorder 1, %s8
    %p111 = scmp.lt.s32.totalorder %s8, 3
    %p112 = pnand %p110, %p111
    %p113 = pneg %p112
    // Predicated region
    $region9: #{cnn_map_encoder_forward.5} parent=5 // pred_check
      _
    $region10: #{cnn_map_encoder_forward.5} parent=5 // pred_check_branch
      %115 = sbr.rel (%p112) target = $region12
    $region11: #{cnn_map_encoder_forward.5} parent=5 // pred_region
      %s116 = ssub.s32 %s8, 1
    $region12: #{cnn_map_encoder_forward.5} parent=5 // pred_fallthru
      _
    %p117 = scmp.lt.s32.totalorder %s8, 2
    // Predicated region
    $region13: #{cnn_map_encoder_forward.5} parent=5 // pred_check
      %p118 = pneg %p117
    $region14: #{cnn_map_encoder_forward.5} parent=5 // pred_check_branch
      %120 = sbr.rel (%p118) target = $region16
    $region15: #{cnn_map_encoder_forward.5} parent=5 // pred_region
      // Predicated region
      $region17: #{cnn_map_encoder_forward.5} parent=15 // pred_check
        %p121 = pneg %p42
      $region18: #{cnn_map_encoder_forward.5} parent=15 // pred_check_branch
        %123 = sbr.rel (%p121) target = $region20
      $region19: #{cnn_map_encoder_forward.5} parent=15 // pred_region
        %s124 = sadd.s32 %s15, %s16
        %p125 = scmp.lt.s32.totalorder %s124, 1
        %s126 = scalar_select %p125, %s124, 1
        %s127 = scalar_lea.vmem %s0, %s126
        %s128 = sadd.s32 %s15, %s16
      $region20: #{cnn_map_encoder_forward.5} parent=15 // pred_fallthru
        _
      // Predicated region
      $region21: #{cnn_map_encoder_forward.5} parent=15 // pred_check
        %p129 = pneg %p70
      $region22: #{cnn_map_encoder_forward.5} parent=15 // pred_check_branch
        %131 = sbr.rel (%p129) target = $region24
      $region23: #{cnn_map_encoder_forward.5} parent=15 // pred_region
        %s132 = sadd.s32 %s15, %s16
        %s133 = smul.u32 16, %s132
        %p134 = scmp.lt.s32.totalorder %s133, 31
        %s135 = scalar_select %p134, %s133, 31
        %s136 = smul.addr %s135, 4
        %s137 = scalar_lea.vmem %s1, %s136
        %s138 = sadd.s32 %s15, %s16
        %s139 = smul.u32 16, %s138
      $region24: #{cnn_map_encoder_forward.5} parent=15 // pred_fallthru
        _
    $region16: #{cnn_map_encoder_forward.5} parent=5 // pred_fallthru
      _
    %p140 = scmp.le.s32.totalorder 1, %s8
    %p141 = scmp.lt.s32.totalorder %s8, 3
    %p142 = pnand %p140, %p141
    %p143 = pneg %p142
    // Predicated region
    $region25: #{cnn_map_encoder_forward.5} parent=5 // pred_check
      _
    $region26: #{cnn_map_encoder_forward.5} parent=5 // pred_check_branch
      %145 = sbr.rel (%p142) target = $region28
    $region27: #{cnn_map_encoder_forward.5} parent=5 // pred_region
      %s146 = ssub.s32 %s8, 1
      %s147 = sadd.s32 %s17, %s18
      %p148 = scmp.lt.s32.totalorder %s147, 1
      %s149 = scalar_select %p148, %s147, 1
      %s150 = scalar_lea.vmem %s0, %s149
      %p151 = pneg %p48
      %p152 = pneg %p45
      %s153 = sadd.s32 %s17, %s18
      %s154 = smul.u32 16, %s153
      %p155 = scmp.lt.s32.totalorder %s154, 31
      %s156 = scalar_select %p155, %s154, 31
      %s157 = smul.addr %s156, 4
      %s158 = scalar_lea.vmem %s1, %s157
      %p159 = pneg %p76
      %p160 = pneg %p73
      %p161 = pneg %p102
      %p162 = pneg %p99
      %p163 = scmp.lt.s32.totalorder %s17, 1
      %s164 = scalar_select %p163, %s17, 1
      %s165 = smul.addr %s164, 2
      %s166 = scalar_lea.vmem %s2, %s165
      %s167 = sadd.s32 %s17, %s18
      %p168 = scmp.lt.s32.totalorder %s167, 1
      %s169 = scalar_select %p168, %s167, 1
      %s170 = scalar_lea.vmem %s0, %s169
      %s171 = sadd.s32 %s17, %s18
      %s172 = sadd.s32 %s17, %s18
      %s173 = smul.u32 16, %s172
      %p174 = scmp.lt.s32.totalorder %s173, 31
      %s175 = scalar_select %p174, %s173, 31
      %s176 = smul.addr %s175, 4
      %s177 = scalar_lea.vmem %s1, %s176
      %s178 = sadd.s32 %s17, %s18
      %s179 = smul.u32 16, %s178
      %p180 = scmp.lt.s32.totalorder %s17, 1
      %s181 = scalar_select %p180, %s17, 1
      %s182 = smul.addr %s181, 2
      %s183 = scalar_lea.vmem %s2, %s182
      %p185 = scmp.eq.s32.totalorder %s18, 0
      // Predicated region
      $region29: #{cnn_map_encoder_forward.5} parent=27 // pred_check
        %p186 = pneg %p185
      $region30: #{cnn_map_encoder_forward.5} parent=27 // pred_check_branch
        %188 = sbr.rel (%p186) target = $region32
      $region31: #{cnn_map_encoder_forward.5} parent=27 // pred_region
        %vm189 = vcmask 254976
        %190 = vst.msk [vmem:[#allocation2] sm:$0x3] %vm189, 0.0
      $region32: #{cnn_map_encoder_forward.5} parent=27 // pred_fallthru
        _
      %v191 = vld [vmem:[#allocation2] sm:$0x3]
      %v192 = vld [vmem:[%s170] sm:$0x1]
      %v193 = vld [vmem:[%s177] sm:$0xf]
      %v194 = vld [vmem:[%s177 + $0x4] sm:$0xf]
      %v195 = vld [vmem:[%s177 + $0x8] sm:$0xf]
      %v196 = vld [vmem:[%s177 + $0xc] sm:$0xf]
      %v197 = vld [vmem:[%s177 + $0x10] sm:$0xf]
      %v198 = vld [vmem:[%s177 + $0x14] sm:$0xf]
      %v199 = vld [vmem:[%s177 + $0x18] sm:$0xf]
      %v200 = vld [vmem:[%s177 + $0x1c] sm:$0xf]
      %v201 = vld [vmem:[%s177 + $0x20] sm:$0xf]
      %v202 = vld [vmem:[%s177 + $0x24] sm:$0xf]
      %v203 = vld [vmem:[%s177 + $0x28] sm:$0xf]
      %v204 = vld [vmem:[%s177 + $0x2c] sm:$0xf]
      %v205 = vld [vmem:[%s177 + $0x30] sm:$0xf]
      %v206 = vld [vmem:[%s177 + $0x34] sm:$0xf]
      %v207 = vld [vmem:[%s177 + $0x38] sm:$0xf]
      %v208 = vld [vmem:[%s177 + $0x3c] sm:$0xf]
      %v225 = vunpack.c.l.b16 %v193
      %v226 = vunpack.c.l.b16 %v194
      %v227 = vunpack.c.l.b16 %v195
      %v228 = vunpack.c.l.b16 %v196
      %v229 = vunpack.c.l.b16 %v197
      %v230 = vunpack.c.l.b16 %v198
      %v231 = vunpack.c.l.b16 %v199
      %v232 = vunpack.c.l.b16 %v200
      %v233 = vunpack.c.l.b16 %v201
      %v234 = vunpack.c.l.b16 %v202
      %v235 = vunpack.c.l.b16 %v203
      %v236 = vunpack.c.l.b16 %v204
      %v237 = vunpack.c.l.b16 %v205
      %v238 = vunpack.c.l.b16 %v206
      %v239 = vunpack.c.l.b16 %v207
      %v240 = vunpack.c.l.b16 %v208
      %v241 = vpack.c.b16 %v226, %v225
      %v242 = vpack.c.b16 %v228, %v227
      %v243 = vpack.c.b16 %v230, %v229
      %v244 = vpack.c.b16 %v232, %v231
      %v245 = vpack.c.b16 %v234, %v233
      %v246 = vpack.c.b16 %v236, %v235
      %v247 = vpack.c.b16 %v238, %v237
      %v248 = vpack.c.b16 %v240, %v239
      %257 = vmatprep.subr.bf16.mxu0 0
      %258 = vmatpush1.bf16.msra.mxu0 %v248
      %259 = vmatprep.subr.bf16.mxu0 0
      %260 = vmatpush1.bf16.msra.mxu0 %v247
      %261 = vmatprep.subr.bf16.mxu0 0
      %262 = vmatpush1.bf16.msra.mxu0 %v246
      %263 = vmatprep.subr.bf16.mxu0 0
      %264 = vmatpush1.bf16.msra.mxu0 %v245
      %265 = vmatprep.subr.bf16.mxu0 0
      %266 = vmatpush1.bf16.msra.mxu0 %v244
      %267 = vmatprep.subr.bf16.mxu0 0
      %268 = vmatpush1.bf16.msra.mxu0 %v243
      %269 = vmatprep.subr.bf16.mxu0 0
      %270 = vmatpush1.bf16.msra.mxu0 %v242
      %271 = vmatprep.subr.bf16.mxu0 0
      %272 = vmatpush1.bf16.msra.mxu0 %v241
      %273 = vmatprep.subr.bf16.mxu0 0
      %274 = vmatpush2.bf16.msra.mxu0 0
      %275 = vmatprep.subr.bf16.mxu0 0
      %276 = vmatpush2.bf16.msra.mxu0 0
      %277 = vmatprep.subr.bf16.mxu0 0
      %278 = vmatpush2.bf16.msra.mxu0 0
      %279 = vmatprep.subr.bf16.mxu0 0
      %280 = vmatpush2.bf16.msra.mxu0 0
      %281 = vmatprep.subr.bf16.mxu0 0
      %282 = vmatpush2.bf16.msra.mxu0 0
      %283 = vmatprep.subr.bf16.mxu0 0
      %284 = vmatpush2.bf16.msra.mxu0 0
      %285 = vmatprep.subr.bf16.mxu0 0
      %286 = vmatpush2.bf16.msra.mxu0 0
      %287 = vmatprep.subr.bf16.mxu0 0
      %288 = vmatpush2.bf16.msra.mxu0 0
      %289 = vmatprep.mubr.bf16.mxu0 0
      %290 = vmatmul.mubr.bf16.gmra.mxu0 %v192
      %v291 = vpop.f32.mrf.mxu0
      %v292 = vadd.f32 0.0, %v291
      %v293 = vpop.f32.mrf.mxu0
      %v294 = vpop.f32.mrf.mxu0
      %v295 = vpop.f32.mrf.mxu0
      %296 = vdwg.mxu0
      %v297 = vadd.f32 %v191, %v292
      %vm298 = vcmask 254976
      %299 = vst.msk [vmem:[#allocation2] sm:$0x3] %vm298, %v297
      // Predicated region
      $region33: #{cnn_map_encoder_forward.5} parent=27 // pred_check
        %p300 = pneg %p185
      $region34: #{cnn_map_encoder_forward.5} parent=27 // pred_check_branch
        %302 = sbr.rel (%p300) target = $region36
      $region35: #{cnn_map_encoder_forward.5} parent=27 // pred_region
        %v303 = vld [vmem:[#allocation2] sm:$0x3]
        %304 = vst.msk [vmem:[%s183] sm:$0x3] %vm298, %v303
      $region36: #{cnn_map_encoder_forward.5} parent=27 // pred_fallthru
        _
      %p305 = scmp.lt.s32.totalorder %s17, 1
      %s306 = scalar_select %p305, %s17, 1
      %s307 = smul.addr %s306, 2
      %s308 = scalar_lea.vmem %s2, %s307
      // Predicated region
      $region37: #{cnn_map_encoder_forward.5} parent=27 // pred_check
        %p309 = pneg %p99
      $region38: #{cnn_map_encoder_forward.5} parent=27 // pred_check_branch
        %311 = sbr.rel (%p309) target = $region40
      $region39: #{cnn_map_encoder_forward.5} parent=27 // pred_region
        _
      $region40: #{cnn_map_encoder_forward.5} parent=27 // pred_fallthru
        _
    $region28: #{cnn_map_encoder_forward.5} parent=5 // pred_fallthru
      _
    %p312 = scmp.le.s32.totalorder 2, %s8
    // Predicated region
    $region41: #{cnn_map_encoder_forward.5} parent=5 // pred_check
      %p313 = pneg %p312
    $region42: #{cnn_map_encoder_forward.5} parent=5 // pred_check_branch
      %315 = sbr.rel (%p313) target = $region44
    $region43: #{cnn_map_encoder_forward.5} parent=5 // pred_region
      %s316 = ssub.s32 %s8, 2
      // Predicated region
      $region45: #{cnn_map_encoder_forward.5} parent=43 // pred_check
        %p317 = pneg %p105
      $region46: #{cnn_map_encoder_forward.5} parent=43 // pred_check_branch
        %319 = sbr.rel (%p317) target = $region48
      $region47: #{cnn_map_encoder_forward.5} parent=43 // pred_region
        %p320 = scmp.lt.s32.totalorder %s19, 1
        %s321 = scalar_select %p320, %s19, 1
        %s322 = smul.addr %s321, 2
        %s323 = scalar_lea.vmem %s2, %s322
      $region48: #{cnn_map_encoder_forward.5} parent=43 // pred_fallthru
        _
    $region44: #{cnn_map_encoder_forward.5} parent=5 // pred_fallthru
      _
  $region6: #{cnn_map_encoder_forward.5} parent=0 // loop_footer
    %s12 = sadd.s32 1, %s8
  $region7: #{cnn_map_encoder_forward.5} parent=0 // loop_footer_branch
    %7 = sbr.rel target = $region3
  $region8: #{cnn_map_encoder_forward.5} parent=0 // loop_exit
    _

// kernel: cnn_map_encoder_forward.4
$region0: #{cnn_map_encoder_forward.4}
  #allocation0 [shape = 'u32[]', space=smem, size = 0x4, offset = 0x4, fixed_abs, tag = 'smem constant byte address 0x4 - core index']
  #allocation1 [shape = 'u32[144,128]{1,0:T(1,128)}', space=vmem, size = 0x12000, scoped, tag = 'internal scratch']
  %s0 = inlined_call_operand.vmem [shape: bf16[18,72], index: 0, kind: input, shape index: {}]
  %s1 = inlined_call_operand.vmem [shape: bf16[72,16], index: 1, kind: input, shape index: {}]
  %s2 = inlined_call_operand.vmem [shape: f32[1,16], index: 2, kind: input, shape index: {}]
  %s3 = inlined_call_operand.vmem [shape: bf16[18,16], index: 3, kind: output, shape index: {}]
  %s4 = sld [smem:[#allocation0]]
  $region22: #{cnn_map_encoder_forward.4} parent=0
    _
  %s6 = ssub.s32 1, %s4
  %s7 = scalar_select 0, %s6, %s4
  // Predicated region
  $region2: #{cnn_map_encoder_forward.4} parent=0 // pred_check
    _
  $region3: #{cnn_map_encoder_forward.4} parent=0 // pred_check_branch
    %9 = sbr.rel (0) target = $region5
  $region4: #{cnn_map_encoder_forward.4} parent=0 // pred_region
    _
  $region5: #{cnn_map_encoder_forward.4} parent=0 // pred_fallthru
    _
  // Predicated region
  $region6: #{cnn_map_encoder_forward.4} parent=0 // pred_check
    _
  $region7: #{cnn_map_encoder_forward.4} parent=0 // pred_check_branch
    %11 = sbr.rel (0) target = $region9
  $region8: #{cnn_map_encoder_forward.4} parent=0 // pred_region
    _
  $region9: #{cnn_map_encoder_forward.4} parent=0 // pred_fallthru
    _
  // Predicated region
  $region10: #{cnn_map_encoder_forward.4} parent=0 // pred_check
    _
  $region11: #{cnn_map_encoder_forward.4} parent=0 // pred_check_branch
    %13 = sbr.rel (0) target = $region13
  $region12: #{cnn_map_encoder_forward.4} parent=0 // pred_region
    _
  $region13: #{cnn_map_encoder_forward.4} parent=0 // pred_fallthru
    _
  %v15 = vld [vmem:[%s0] sm:$0xf]
  %v16 = vld [vmem:[%s0 + $0x4] sm:$0xf]
  %v17 = vld [vmem:[%s0 + $0x8] sm:$0x1]
  %v18 = vld [vmem:[%s1] sm:$0xf]
  %v19 = vld [vmem:[%s1 + $0x4] sm:$0xf]
  %v20 = vld [vmem:[%s1 + $0x8] sm:$0xf]
  %v21 = vld [vmem:[%s1 + $0xc] sm:$0xf]
  %v22 = vld [vmem:[%s1 + $0x10] sm:$0xf]
  %v23 = vld [vmem:[%s1 + $0x14] sm:$0xf]
  %v24 = vld [vmem:[%s1 + $0x18] sm:$0xf]
  %v25 = vld [vmem:[%s1 + $0x1c] sm:$0xf]
  %v26 = vld [vmem:[%s1 + $0x20] sm:$0xf]
  %v27 = vld [vmem:[%s2] sm:$0x1]
  %v29 = vlaneseq
  %v30 = vshrl.u32 %v29, 7
  %v31 = vsub.s32 0, %v30
  %v32 = vrot.slane %v27, %v31
  %v37 = vunpack.c.l.b16 %v15
  %v38 = vunpack.c.l.b16 %v16
  %v39 = vunpack.c.l.b16 %v17
  %v40 = vpack.c.b16 %v38, %v37
  %v41 = vpack.c.b16 %v39, %v39
  %v51 = vunpack.c.l.b16 %v18
  %v52 = vunpack.c.l.b16 %v19
  %v53 = vunpack.c.l.b16 %v20
  %v54 = vunpack.c.l.b16 %v21
  %v55 = vunpack.c.l.b16 %v22
  %v56 = vunpack.c.l.b16 %v23
  %v57 = vunpack.c.l.b16 %v24
  %v58 = vunpack.c.l.b16 %v25
  %v59 = vunpack.c.l.b16 %v26
  %v60 = vpack.c.b16 %v52, %v51
  %v61 = vpack.c.b16 %v54, %v53
  %v62 = vpack.c.b16 %v56, %v55
  %v63 = vpack.c.b16 %v58, %v57
  %v64 = vpack.c.b16 %v59, %v59
  %vm69 = vcmask 588800
  %v71 = vsel %vm69, %v40, 0
  %v74 = vsel %vm69, %v41, 0
  %vm76 = vcmask 1043456
  %v78 = vsel %vm76, %v64, 0
  %80 = vmatprep.subr.bf16.mxu0 0
  %81 = vmatpush1.bf16.msra.mxu0 0
  %82 = vmatprep.subr.bf16.mxu0 0
  %83 = vmatpush1.bf16.msra.mxu0 0
  %84 = vmatprep.subr.bf16.mxu0 0
  %85 = vmatpush1.bf16.msra.mxu0 0
  %86 = vmatprep.subr.bf16.mxu0 0
  %87 = vmatpush1.bf16.msra.mxu0 %v78
  %88 = vmatprep.subr.bf16.mxu0 0
  %89 = vmatpush1.bf16.msra.mxu0 %v63
  %90 = vmatprep.subr.bf16.mxu0 0
  %91 = vmatpush1.bf16.msra.mxu0 %v62
  %92 = vmatprep.subr.bf16.mxu0 0
  %93 = vmatpush1.bf16.msra.mxu0 %v61
  %94 = vmatprep.subr.bf16.mxu0 0
  %95 = vmatpush1.bf16.msra.mxu0 %v60
  %96 = vmatprep.subr.bf16.mxu0 0
  %97 = vmatpush2.bf16.msra.mxu0 0
  %98 = vmatprep.subr.bf16.mxu0 0
  %99 = vmatpush2.bf16.msra.mxu0 0
  %100 = vmatprep.subr.bf16.mxu0 0
  %101 = vmatpush2.bf16.msra.mxu0 0
  %102 = vmatprep.subr.bf16.mxu0 0
  %103 = vmatpush2.bf16.msra.mxu0 0
  %104 = vmatprep.subr.bf16.mxu0 0
  %105 = vmatpush2.bf16.msra.mxu0 0
  %106 = vmatprep.subr.bf16.mxu0 0
  %107 = vmatpush2.bf16.msra.mxu0 0
  %108 = vmatprep.subr.bf16.mxu0 0
  %109 = vmatpush2.bf16.msra.mxu0 0
  %110 = vmatprep.subr.bf16.mxu0 0
  %111 = vmatpush2.bf16.msra.mxu0 0
  %112 = vmatprep.mubr.bf16.mxu0 0
  %113 = vmatmul.mubr.bf16.gmra.mxu0 %v71
  %v114 = vpop.f32.mrf.mxu0
  %v115 = vadd.f32 %v32, %v114
  %v116 = vpop.f32.mrf.mxu0
  %v117 = vpop.f32.mrf.mxu0
  %v118 = vadd.f32 %v32, %v117
  %v119 = vpop.f32.mrf.mxu0
  %120 = vmatprep.mubr.bf16.mxu0 0
  %121 = vmatmul.mubr.bf16.gmra.mxu0 %v74
  %v122 = vpop.f32.mrf.mxu0
  %v123 = vadd.f32 %v32, %v122
  %v124 = vpop.f32.mrf.mxu0
  %v125 = vpop.f32.mrf.mxu0
  %v126 = vpop.f32.mrf.mxu0
  %127 = vdwg.mxu0
  %vm128 = vcmp.ge.f32.partialorder %v115, 0.0
  %vm129 = vcmp.ge.f32.partialorder %v118, 0.0
  %vm130 = vcmp.ge.f32.partialorder %v123, 0.0
  %v131 = vmul.f32 %v115, 0.2
  %v132 = vmul.f32 %v118, 0.2
  %v133 = vmul.f32 %v123, 0.2
  %v134 = vsel %vm128, %v115, %v131
  %v135 = vsel %vm129, %v118, %v132
  %v136 = vsel %vm130, %v123, %v133
  %v137 = vpack.c.bf16 %v135, %v134
  %v138 = vpack.c.bf16 %v136, %v136
  %v141 = vunpack.c.l.b16 %v137
  %v142 = vunpack.c.h.b16 %v137
  %v143 = vunpack.c.l.b16 %v138
  %v144 = vpack.c.b16 %v141, %v141
  %v145 = vpack.c.b16 %v142, %v142
  %v146 = vpack.c.b16 %v143, %v143
  %vm150 = vcmask 125952
  %151 = vst.msk [vmem:[%s3] sm:$0xf] %vm150, %v144
  %152 = vst.msk [vmem:[%s3 + $0x4] sm:$0xf] %vm150, %v145
  %vm153 = vcmask 122880
  %154 = vst.msk [vmem:[%s3 + $0x8] sm:$0x1] %vm153, %v146
  // Predicated region
  $region14: #{cnn_map_encoder_forward.4} parent=0 // pred_check
    _
  $region15: #{cnn_map_encoder_forward.4} parent=0 // pred_check_branch
    %156 = sbr.rel (0) target = $region17
  $region16: #{cnn_map_encoder_forward.4} parent=0 // pred_region
    _
  $region17: #{cnn_map_encoder_forward.4} parent=0 // pred_fallthru
    _
  // Predicated region
  $region18: #{cnn_map_encoder_forward.4} parent=0 // pred_check
    _
  $region19: #{cnn_map_encoder_forward.4} parent=0 // pred_check_branch
    %158 = sbr.rel (0) target = $region21
  $region20: #{cnn_map_encoder_forward.4} parent=0 // pred_region
    _
  $region21: #{cnn_map_encoder_forward.4} parent=0 // pred_fallthru
    _

</llo_original>
